<compile_context>
chip_gen: v7x
topology: tpu7x:2x2x1
jax: 0.10.0
libtpu: 0.0.40
codegen_flags: <defaults>
</compile_context>

<pallas_src>
import jax
import jax.numpy as jnp
from jax.experimental import pallas as pl
from jax.experimental.pallas import tpu as pltpu

EPS = 1e-5


def _make_ln_parallel_kernel(num_parallel, eps):
    def kernel(w_ref, b_ref, *rest):
        x_refs = rest[:num_parallel]
        o_refs = rest[num_parallel:]
        for p in range(num_parallel):                       # static unroll, small P
            x = x_refs[p][...].astype(jnp.float32)          # (tn, C)
            inv_c = 1.0 / x.shape[-1]
            mean = jnp.sum(x, axis=-1, keepdims=True) * inv_c
            diff = x - mean
            var = jnp.sum(diff * diff, axis=-1, keepdims=True) * inv_c   # biased
            inv_std = jax.lax.rsqrt(var + eps)              # EUP slot
            w = w_ref[p:p + 1, :].astype(jnp.float32)       # (1, C), resident
            b = b_ref[p:p + 1, :].astype(jnp.float32)
            o_refs[p][...] = (diff * inv_std * w + b).astype(o_refs[p].dtype)
    return kernel


def _vmem_capacity_bytes():
    """Per-TensorCore VMEM capacity; conservative fallback (v7x = 64 MiB)."""
    try:
        return int(pltpu.get_tpu_info().vmem_capacity_bytes)
    except Exception:
        return 64 * 1024 * 1024


def _pick_row_tile(n_rows, num_parallel, c, itemsize, budget_bytes):
    """Row tile: multiple of the dtype's sublane pack, large enough to amortize
    the ~0.35us/step grid overhead, small enough that double-buffered in+out
    blocks fit the VMEM budget and the grid keeps >=2 (ideally >=4) steps for
    pipelining and v7x dual-core sharding."""
    pack = {4: 8, 2: 16, 1: 32}.get(itemsize, 8)

    def ceil_to_pack(v):
        return -(-v // pack) * pack

    per_row = 4 * num_parallel * c * itemsize          # 2x in + 2x out buffers
    tn = max(pack, (budget_bytes // per_row) // pack * pack)
    tn = min(tn, 2048)                                 # measured roofline sweet spot

    if n_rows >= 4 * pack:                             # >= ~4 grid steps (pipelining)
        tn = min(tn, max(pack, ceil_to_pack(n_rows // 4)))
    elif n_rows >= 2 * pack:                           # >= 2 steps (v7x's 2 TCs)
        tn = min(tn, max(pack, ceil_to_pack(n_rows // 2)))
    tn = min(tn, ceil_to_pack(n_rows))                 # never exceed the array
    return tn


def layer_norm_parallel(x_list, weight, bias, eps=EPS):
    """List-in / list-out forward matching the PyTorch module.

    x_list:  list of P arrays, each (..., C)
    weight:  (P, C) per-branch LayerNorm weights
    bias:    (P, C) per-branch LayerNorm biases
    returns: list of P arrays with the original shapes
    """
    P = len(x_list)
    C = weight.shape[-1]
    assert weight.shape == (P, C) and bias.shape == (P, C)

    orig_shapes = [x.shape for x in x_list]
    xs = [x.reshape(-1, C) for x in x_list]            # free (metadata-only) reshape
    N = xs[0].shape[0]
    # TODO(synk): branches with differing row counts would need separate calls.
    for x in xs:
        assert x.shape == (N, C), "all parallel branches must share a shape"
    dtype = xs[0].dtype
    itemsize = jnp.dtype(dtype).itemsize
    p_itemsize = jnp.dtype(weight.dtype).itemsize

    vmem_cap = _vmem_capacity_bytes()
    budget = min(24 << 20, vmem_cap // 4)              # generation-aware budget
    tn = _pick_row_tile(N, P, C, itemsize, budget)
    grid = (pl.cdiv(N, tn),)

    row_spec = pl.BlockSpec((tn, C), lambda i: (i, 0))
    param_spec = pl.BlockSpec((P, C), lambda i: (0, 0))  # constant -> resident in VMEM

    # VMEM accounting: double-buffered in+out row blocks + (conservatively
    # double-buffered) params; keep the limit >= the default scoped size.
    block_bytes = 4 * P * tn * C * itemsize
    param_bytes = 2 * 2 * P * C * p_itemsize
    vmem_limit = max(int(block_bytes + param_bytes) + (8 << 20), 32 << 20)

    cost = pl.CostEstimate(
        flops=int(7 * P * N * C),
        transcendentals=int(P * N),
        bytes_accessed=int(2 * P * N * C * itemsize + 2 * P * C * p_itemsize),
    )

    outs = pl.pallas_call(
        _make_ln_parallel_kernel(P, eps),
        out_shape=tuple(jax.ShapeDtypeStruct((N, C), x.dtype) for x in xs),
        grid_spec=pltpu.PrefetchScalarGridSpec(
            num_scalar_prefetch=0,
            grid=grid,
            in_specs=[param_spec, param_spec] + [row_spec] * P,
            out_specs=tuple([row_spec] * P),
        ),
        compiler_params=pltpu.CompilerParams(
            dimension_semantics=("parallel",),
            vmem_limit_bytes=vmem_limit),
        cost_estimate=cost,
    )(weight, bias, *xs)

    return [o.reshape(s) for o, s in zip(outs, orig_shapes)]


def _reference(x_list, weight, bias, eps=EPS):
    outs = []
    for i, x in enumerate(x_list):
        xf = x.astype(jnp.float32)
        mean = jnp.mean(xf, axis=-1, keepdims=True)
        var = jnp.mean((xf - mean) ** 2, axis=-1, keepdims=True)
        y = (xf - mean) / jnp.sqrt(var + eps) * weight[i] + bias[i]
        outs.append(y.astype(x.dtype))
    return outs


if __name__ == "__main__":
    key = jax.random.PRNGKey(0)
    num_parallel = 2       # P: number of parallel LayerNorm branches
    batch, seq = 2, 8      # leading dims (flattened to 16 rows -> 2 grid steps)
    num_features = 128     # normalized_shape (C) — lane-dense multiple of 128

    k_x, k_w, k_b = jax.random.split(key, 3)
    x_list = [
        jax.random.normal(jax.random.fold_in(k_x, i),
                          (batch, seq, num_features), dtype=jnp.float32)
        for i in range(num_parallel)
    ]
    # PyTorch default init is weight=1, bias=0; use nontrivial deterministic
    # values so the per-branch affine path is exercised.
    weight = 1.0 + 0.1 * jax.random.normal(k_w, (num_parallel, num_features),
                                           dtype=jnp.float32)
    bias = 0.1 * jax.random.normal(k_b, (num_parallel, num_features),
                                   dtype=jnp.float32)

    outs = layer_norm_parallel(x_list, weight, bias)
    outs = [jax.block_until_ready(o) for o in outs]

    refs = _reference(x_list, weight, bias)
    for o, r in zip(outs, refs):
        assert o.shape == r.shape
        assert jnp.allclose(o, r, atol=2e-5, rtol=1e-5), "mismatch vs reference"

    print("KERNEL_OK")
</pallas_src>

<mosaic_0001>
module attributes {stable_mosaic.version = 11 : i64} {
  func.func @kernel(%arg0: i32, %arg1: memref<2x128xf32, #tpu.memory_space<vmem>>, %arg2: memref<2x128xf32, #tpu.memory_space<vmem>>, %arg3: memref<8x128xf32, #tpu.memory_space<vmem>>, %arg4: memref<8x128xf32, #tpu.memory_space<vmem>>, %arg5: memref<8x128xf32, #tpu.memory_space<vmem>>, %arg6: memref<8x128xf32, #tpu.memory_space<vmem>>) attributes {dimension_semantics = [#tpu.dimension_semantics<parallel>], iteration_bounds = array<i64: 2>, scalar_prefetch = 0 : i64, scratch_operands = 0 : i64, tpu.core_type = #tpu.core_type<tc>, window_params = [{pipeline_mode = #tpu.pipeline_mode<synchronous>, transform_indices = @transform_0, window_bounds = array<i64: 2, 128>}, {pipeline_mode = #tpu.pipeline_mode<synchronous>, transform_indices = @transform_1, window_bounds = array<i64: 2, 128>}, {transform_indices = @transform_2, window_bounds = array<i64: 8, 128>}, {transform_indices = @transform_3, window_bounds = array<i64: 8, 128>}, {transform_indices = @transform_4, window_bounds = array<i64: 8, 128>}, {transform_indices = @transform_5, window_bounds = array<i64: 8, 128>}]} {
    %c0 = arith.constant 0 : index
    %c0_0 = arith.constant 0 : index
    %0 = vector.load %arg3[%c0, %c0_0] : memref<8x128xf32, #tpu.memory_space<vmem>>, vector<8x128xf32>
    %cst = arith.constant dense<0.000000e+00> : vector<8xf32>
    %1 = vector.multi_reduction <add>, %0, %cst [1] : vector<8x128xf32> to vector<8xf32>
    %2 = vector.shape_cast %1 : vector<8xf32> to vector<8x1xf32>
    %cst_1 = arith.constant 7.812500e-03 : f32
    %3 = vector.broadcast %cst_1 : f32 to vector<8x1xf32>
    %4 = arith.mulf %2, %3 : vector<8x1xf32>
    %5 = vector.broadcast %4 : vector<8x1xf32> to vector<8x128xf32>
    %6 = arith.subf %0, %5 : vector<8x128xf32>
    %7 = arith.mulf %6, %6 : vector<8x128xf32>
    %cst_2 = arith.constant dense<0.000000e+00> : vector<8xf32>
    %8 = vector.multi_reduction <add>, %7, %cst_2 [1] : vector<8x128xf32> to vector<8xf32>
    %9 = vector.shape_cast %8 : vector<8xf32> to vector<8x1xf32>
    %cst_3 = arith.constant 7.812500e-03 : f32
    %10 = vector.broadcast %cst_3 : f32 to vector<8x1xf32>
    %11 = arith.mulf %9, %10 : vector<8x1xf32>
    %cst_4 = arith.constant 9.99999974E-6 : f32
    %12 = vector.broadcast %cst_4 : f32 to vector<8x1xf32>
    %13 = arith.addf %11, %12 : vector<8x1xf32>
    %14 = math.rsqrt %13 : vector<8x1xf32>
    %c0_5 = arith.constant 0 : index
    %c0_6 = arith.constant 0 : index
    %15 = vector.load %arg1[%c0_5, %c0_6] : memref<2x128xf32, #tpu.memory_space<vmem>>, vector<1x128xf32>
    %c0_7 = arith.constant 0 : index
    %c0_8 = arith.constant 0 : index
    %16 = vector.load %arg2[%c0_7, %c0_8] : memref<2x128xf32, #tpu.memory_space<vmem>>, vector<1x128xf32>
    %17 = vector.broadcast %14 : vector<8x1xf32> to vector<8x128xf32>
    %18 = arith.mulf %6, %17 : vector<8x128xf32>
    %19 = vector.broadcast %15 : vector<1x128xf32> to vector<8x128xf32>
    %20 = arith.mulf %18, %19 : vector<8x128xf32>
    %21 = vector.broadcast %16 : vector<1x128xf32> to vector<8x128xf32>
    %22 = arith.addf %20, %21 : vector<8x128xf32>
    %c0_9 = arith.constant 0 : index
    %c0_10 = arith.constant 0 : index
    %23 = vector.load %arg5[%c0_9, %c0_10] : memref<8x128xf32, #tpu.memory_space<vmem>>, vector<8x128xf32>
    tpu.vector_store %arg5[%c0_9, %c0_10], %22 {strides = array<i32>} : memref<8x128xf32, #tpu.memory_space<vmem>>, vector<8x128xf32>,
    %c0_11 = arith.constant 0 : index
    %c0_12 = arith.constant 0 : index
    %24 = vector.load %arg4[%c0_11, %c0_12] : memref<8x128xf32, #tpu.memory_space<vmem>>, vector<8x128xf32>
    %cst_13 = arith.constant dense<0.000000e+00> : vector<8xf32>
    %25 = vector.multi_reduction <add>, %24, %cst_13 [1] : vector<8x128xf32> to vector<8xf32>
    %26 = vector.shape_cast %25 : vector<8xf32> to vector<8x1xf32>
    %cst_14 = arith.constant 7.812500e-03 : f32
    %27 = vector.broadcast %cst_14 : f32 to vector<8x1xf32>
    %28 = arith.mulf %26, %27 : vector<8x1xf32>
    %29 = vector.broadcast %28 : vector<8x1xf32> to vector<8x128xf32>
    %30 = arith.subf %24, %29 : vector<8x128xf32>
    %31 = arith.mulf %30, %30 : vector<8x128xf32>
    %cst_15 = arith.constant dense<0.000000e+00> : vector<8xf32>
    %32 = vector.multi_reduction <add>, %31, %cst_15 [1] : vector<8x128xf32> to vector<8xf32>
    %33 = vector.shape_cast %32 : vector<8xf32> to vector<8x1xf32>
    %cst_16 = arith.constant 7.812500e-03 : f32
    %34 = vector.broadcast %cst_16 : f32 to vector<8x1xf32>
    %35 = arith.mulf %33, %34 : vector<8x1xf32>
    %cst_17 = arith.constant 9.99999974E-6 : f32
    %36 = vector.broadcast %cst_17 : f32 to vector<8x1xf32>
    %37 = arith.addf %35, %36 : vector<8x1xf32>
    %38 = math.rsqrt %37 : vector<8x1xf32>
    %c1 = arith.constant 1 : index
    %c0_18 = arith.constant 0 : index
    %39 = vector.load %arg1[%c1, %c0_18] : memref<2x128xf32, #tpu.memory_space<vmem>>, vector<1x128xf32>
    %c1_19 = arith.constant 1 : index
    %c0_20 = arith.constant 0 : index
    %40 = vector.load %arg2[%c1_19, %c0_20] : memref<2x128xf32, #tpu.memory_space<vmem>>, vector<1x128xf32>
    %41 = vector.broadcast %38 : vector<8x1xf32> to vector<8x128xf32>
    %42 = arith.mulf %30, %41 : vector<8x128xf32>
    %43 = vector.broadcast %39 : vector<1x128xf32> to vector<8x128xf32>
    %44 = arith.mulf %42, %43 : vector<8x128xf32>
    %45 = vector.broadcast %40 : vector<1x128xf32> to vector<8x128xf32>
    %46 = arith.addf %44, %45 : vector<8x128xf32>
    %c0_21 = arith.constant 0 : index
    %c0_22 = arith.constant 0 : index
    %47 = vector.load %arg6[%c0_21, %c0_22] : memref<8x128xf32, #tpu.memory_space<vmem>>, vector<8x128xf32>
    tpu.vector_store %arg6[%c0_21, %c0_22], %46 {strides = array<i32>} : memref<8x128xf32, #tpu.memory_space<vmem>>, vector<8x128xf32>,
    return
  }
  func.func @transform_0(%arg0: i32) -> (i32, i32) {
    %c0_i32 = arith.constant 0 : i32
    %c0_i32_0 = arith.constant 0 : i32
    %c0_i32_1 = arith.constant 0 : i32
    return %c0_i32, %c0_i32_0 : i32, i32
  }
  func.func @transform_1(%arg0: i32) -> (i32, i32) {
    %c0_i32 = arith.constant 0 : i32
    %c0_i32_0 = arith.constant 0 : i32
    %c0_i32_1 = arith.constant 0 : i32
    return %c0_i32, %c0_i32_0 : i32, i32
  }
  func.func @transform_2(%arg0: i32) -> (i32, i32) {
    %c0_i32 = arith.constant 0 : i32
    %c0_i32_0 = arith.constant 0 : i32
    return %arg0, %c0_i32 : i32, i32
  }
  func.func @transform_3(%arg0: i32) -> (i32, i32) {
    %c0_i32 = arith.constant 0 : i32
    %c0_i32_0 = arith.constant 0 : i32
    return %arg0, %c0_i32 : i32, i32
  }
  func.func @transform_4(%arg0: i32) -> (i32, i32) {
    %c0_i32 = arith.constant 0 : i32
    %c0_i32_0 = arith.constant 0 : i32
    return %arg0, %c0_i32 : i32, i32
  }
  func.func @transform_5(%arg0: i32) -> (i32, i32) {
    %c0_i32 = arith.constant 0 : i32
    %c0_i32_0 = arith.constant 0 : i32
    return %arg0, %c0_i32 : i32, i32
  }
}

</mosaic_0001>

<llo_original>
// kernel: tpu_custom_call.1
$region0: #{tpu_custom_call.1}
  #allocation0 [shape = 'u32[]', space=smem, size = 0x4, offset = 0x4, fixed_abs, tag = 'smem constant byte address 0x4 - core index']
  #allocation1 [shape = 'u32[144,128]{1,0:T(1,128)}', space=vmem, size = 0x12000, scoped, tag = 'internal scratch']
  %s0 = inlined_call_operand.hbm [shape: f32[2,128], index: 0, kind: input, shape index: {}]
  %s1 = inlined_call_operand.vmem [shape: f32[2,128], index: 1, kind: input, shape index: {}]
  %s2 = inlined_call_operand.hbm [shape: f32[16,128], index: 2, kind: input, shape index: {}]
  %s3 = inlined_call_operand.hbm [shape: f32[16,128], index: 3, kind: input, shape index: {}]
  %s4 = inlined_call_operand.hbm [shape: f32[16,128], index: 4, kind: output, shape index: {0}]
  %s5 = inlined_call_operand.hbm [shape: f32[16,128], index: 5, kind: output, shape index: {1}]
  %6 = xla_tuple %s4, %s5
  %s7 = sld [smem:[#allocation0]]
  $region69: #{tpu_custom_call.1} parent=0
    _
  %s9 = ssub.s32 1, %s7
  %s10 = scalar_select 0, %s9, %s7
  $region1: #{tpu_custom_call.1} parent=0
    #allocation2 [shape = 'u8[1024]{0}', space=vmem, size = 0x400, scoped, tag = 'input window, operand 0, single buffered']
    #allocation3 [shape = 's32[2]{0}', space=sflag, size = 0x8, scoped, tag = 'scoped memory for tpu_custom_call.1']
    #allocation4 [shape = 's32[2]{0}', space=sflag, size = 0x8, scoped, tag = 'scoped memory for tpu_custom_call.1']
    #allocation5 [shape = 'u8[8192]{0}', space=vmem, size = 0x2000, scoped, tag = 'input window, operand 2']
    #allocation6 [shape = 's32[2]{0}', space=sflag, size = 0x8, scoped, tag = 'scoped memory for tpu_custom_call.1']
    #allocation7 [shape = 'u8[8192]{0}', space=vmem, size = 0x2000, scoped, tag = 'input window, operand 3']
    #allocation8 [shape = 'u8[8192]{0}', space=vmem, size = 0x2000, scoped, tag = 'output window, operand 0']
    #allocation9 [shape = 'u8[8192]{0}', space=vmem, size = 0x2000, scoped, tag = 'output window, operand 1']
    #allocation10 [shape = 's32[2]{0}', space=sflag, size = 0x8, scoped, tag = 'scoped memory for tpu_custom_call.1']
    %11 = vsyncpa [#allocation3], 0
    %12 = vsyncpa [#allocation6], 0
    %s13 = scalar_lea.sflag [#allocation6], 1
    %14 = vsyncpa %s13, 0
    %15 = vsyncpa [#allocation4], 0
    %s16 = scalar_lea.sflag [#allocation4], 1
    %17 = vsyncpa %s16, 0
    %18 = vsyncpa [#allocation10], 0
    %s19 = scalar_lea.sflag [#allocation10], 1
    %20 = vsyncpa %s19, 0
    loop: start=0, step=1, limit=4
    $region2: #{tpu_custom_call.1} parent=1 // loop_pre_header
      _
    $region3: #{tpu_custom_call.1} parent=1 // loop_header
      %s22 = sphi 0, %s26
      %p23 = scmp.ge.s32.totalorder %s22, 4
      %s30 = sphi 0, %s30
      %s32 = sphi 0, %s30
      %s33 = sphi 0, %s32
      %s47 = sphi 0, %s33
      %s51 = sphi 0, %s51
      %s53 = sphi 0, %s51
      %s54 = sphi 0, %s53
      %s68 = sphi 0, %s54
      %s74 = sphi 0, %s76
      %s77 = sphi 0, %s74
      %s78 = sphi 0, %s77
      %s94 = sphi 0, %s78
      %s100 = sphi 0, %s102
      %s103 = sphi 0, %s100
      %s104 = sphi 0, %s103
      %s120 = sphi 0, %s104
      %s126 = sphi 0, %s128
      %s129 = sphi 0, %s126
      %s130 = sphi 0, %s129
      %s146 = sphi 0, %s130
      %s152 = sphi 0, %s154
      %s155 = sphi 0, %s152
      %s156 = sphi 0, %s155
      %s172 = sphi 0, %s156
    $region4: #{tpu_custom_call.1} parent=1 // loop_header_branch
      %25 = sbr.rel (%p23) target = $region8
    $region5: #{tpu_custom_call.1} parent=1 // loop_body
      %s27 = ssub.s32 %s22, 1
      %s28 = ssub.s32 %s22, 2
      %s29 = sadd.s32 %s22, 1
      %s31 = sadd.s32 %s30, 1
      %p34 = scmp.eq.s32.totalorder %s22, 1
      %p35 = scmp.ne.s32.totalorder %s30, %s32
      %p36 = scmp.eq.s32.totalorder %s22, 0
      %p37 = por %p35, %p36
      %p38 = scmp.ne.s32.totalorder %s30, %s32
      %p39 = scmp.eq.s32.totalorder %s27, 1
      %p40 = por %p38, %p39
      %p41 = scmp.ne.s32.totalorder %s32, %s33
      %p42 = scmp.eq.s32.totalorder %s27, 0
      %p43 = por %p41, %p42
      %p44 = scmp.ne.s32.totalorder %s32, %s33
      %p45 = scmp.eq.s32.totalorder %s28, 1
      %p46 = por %p44, %p45
      %p48 = scmp.ne.s32.totalorder %s33, %s47
      %p49 = scmp.eq.s32.totalorder %s28, 0
      %p50 = por %p48, %p49
      %s52 = sadd.s32 %s51, 1
      %p55 = scmp.eq.s32.totalorder %s22, 1
      %p56 = scmp.ne.s32.totalorder %s51, %s53
      %p57 = scmp.eq.s32.totalorder %s22, 0
      %p58 = por %p56, %p57
      %p59 = scmp.ne.s32.totalorder %s51, %s53
      %p60 = scmp.eq.s32.totalorder %s27, 1
      %p61 = por %p59, %p60
      %p62 = scmp.ne.s32.totalorder %s53, %s54
      %p63 = scmp.eq.s32.totalorder %s27, 0
      %p64 = por %p62, %p63
      %p65 = scmp.ne.s32.totalorder %s53, %s54
      %p66 = scmp.eq.s32.totalorder %s28, 1
      %p67 = por %p65, %p66
      %p69 = scmp.ne.s32.totalorder %s54, %s68
      %p70 = scmp.eq.s32.totalorder %s28, 0
      %p71 = por %p69, %p70
      %s72 = ssub.s32 %s22, %s29
      %p73 = scmp.eq.s32.totalorder %s72, 0
      %s75 = sadd.s32 %s74, 1
      %s76 = scalar_select %p73, %s74, %s75
      %p79 = pneg %p73
      %p80 = scmp.eq.s32.totalorder %s22, 1
      %p81 = por %p79, %p80
      %p82 = scmp.ne.s32.totalorder %s74, %s77
      %p83 = scmp.eq.s32.totalorder %s22, 0
      %p84 = por %p82, %p83
      %p85 = scmp.ne.s32.totalorder %s74, %s77
      %p86 = scmp.eq.s32.totalorder %s27, 1
      %p87 = por %p85, %p86
      %p88 = scmp.ne.s32.totalorder %s77, %s78
      %p89 = scmp.eq.s32.totalorder %s27, 0
      %p90 = por %p88, %p89
      %p91 = scmp.ne.s32.totalorder %s77, %s78
      %p92 = scmp.eq.s32.totalorder %s28, 1
      %p93 = por %p91, %p92
      %p95 = scmp.ne.s32.totalorder %s78, %s94
      %p96 = scmp.eq.s32.totalorder %s28, 0
      %p97 = por %p95, %p96
      %s98 = ssub.s32 %s22, %s29
      %p99 = scmp.eq.s32.totalorder %s98, 0
      %s101 = sadd.s32 %s100, 1
      %s102 = scalar_select %p99, %s100, %s101
      %p105 = pneg %p99
      %p106 = scmp.eq.s32.totalorder %s22, 1
      %p107 = por %p105, %p106
      %p108 = scmp.ne.s32.totalorder %s100, %s103
      %p109 = scmp.eq.s32.totalorder %s22, 0
      %p110 = por %p108, %p109
      %p111 = scmp.ne.s32.totalorder %s100, %s103
      %p112 = scmp.eq.s32.totalorder %s27, 1
      %p113 = por %p111, %p112
      %p114 = scmp.ne.s32.totalorder %s103, %s104
      %p115 = scmp.eq.s32.totalorder %s27, 0
      %p116 = por %p114, %p115
      %p117 = scmp.ne.s32.totalorder %s103, %s104
      %p118 = scmp.eq.s32.totalorder %s28, 1
      %p119 = por %p117, %p118
      %p121 = scmp.ne.s32.totalorder %s104, %s120
      %p122 = scmp.eq.s32.totalorder %s28, 0
      %p123 = por %p121, %p122
      %s124 = ssub.s32 %s22, %s29
      %p125 = scmp.eq.s32.totalorder %s124, 0
      %s127 = sadd.s32 %s126, 1
      %s128 = scalar_select %p125, %s126, %s127
      %p131 = pneg %p125
      %p132 = scmp.eq.s32.totalorder %s22, 1
      %p133 = por %p131, %p132
      %p134 = scmp.ne.s32.totalorder %s126, %s129
      %p135 = scmp.eq.s32.totalorder %s22, 0
      %p136 = por %p134, %p135
      %p137 = scmp.ne.s32.totalorder %s126, %s129
      %p138 = scmp.eq.s32.totalorder %s27, 1
      %p139 = por %p137, %p138
      %p140 = scmp.ne.s32.totalorder %s129, %s130
      %p141 = scmp.eq.s32.totalorder %s27, 0
      %p142 = por %p140, %p141
      %p143 = scmp.ne.s32.totalorder %s129, %s130
      %p144 = scmp.eq.s32.totalorder %s28, 1
      %p145 = por %p143, %p144
      %p147 = scmp.ne.s32.totalorder %s130, %s146
      %p148 = scmp.eq.s32.totalorder %s28, 0
      %p149 = por %p147, %p148
      %s150 = ssub.s32 %s22, %s29
      %p151 = scmp.eq.s32.totalorder %s150, 0
      %s153 = sadd.s32 %s152, 1
      %s154 = scalar_select %p151, %s152, %s153
      %p157 = pneg %p151
      %p158 = scmp.eq.s32.totalorder %s22, 1
      %p159 = por %p157, %p158
      %p160 = scmp.ne.s32.totalorder %s152, %s155
      %p161 = scmp.eq.s32.totalorder %s22, 0
      %p162 = por %p160, %p161
      %p163 = scmp.ne.s32.totalorder %s152, %s155
      %p164 = scmp.eq.s32.totalorder %s27, 1
      %p165 = por %p163, %p164
      %p166 = scmp.ne.s32.totalorder %s155, %s156
      %p167 = scmp.eq.s32.totalorder %s27, 0
      %p168 = por %p166, %p167
      %p169 = scmp.ne.s32.totalorder %s155, %s156
      %p170 = scmp.eq.s32.totalorder %s28, 1
      %p171 = por %p169, %p170
      %p173 = scmp.ne.s32.totalorder %s156, %s172
      %p174 = scmp.eq.s32.totalorder %s28, 0
      %p175 = por %p173, %p174
      %p176 = scmp.le.s32.totalorder 1, %s22
      %p177 = scmp.lt.s32.totalorder %s22, 3
      %p178 = pnand %p176, %p177
      %p179 = pneg %p178
      // Predicated region
      $region9: #{tpu_custom_call.1} parent=5 // pred_check
        _
      $region10: #{tpu_custom_call.1} parent=5 // pred_check_branch
        %181 = sbr.rel (%p178) target = $region12
      $region11: #{tpu_custom_call.1} parent=5 // pred_region
        %s182 = ssub.s32 %s22, 1
        // Predicated region
        $region13: #{tpu_custom_call.1} parent=11 // pred_check
          %p183 = pneg %p43
        $region14: #{tpu_custom_call.1} parent=11 // pred_check_branch
          %185 = sbr.rel (%p183) target = $region16
        $region15: #{tpu_custom_call.1} parent=11 // pred_region
          %s187 = ssub.s32 32, 32
          %188 = vsyncadd [#allocation3], %s187
          %s190 = sshll.u32 [#allocation2], 4
          %s191 = int_to_ptr.vmem [resolvable:$true] %s190
          %193 = dma.hbm_to_vmem [thread:$0]  %s0, 32, %s191, [#allocation3]
        $region16: #{tpu_custom_call.1} parent=11 // pred_fallthru
          _
        // Predicated region
        $region17: #{tpu_custom_call.1} parent=11 // pred_check
          %p194 = pneg %p64
        $region18: #{tpu_custom_call.1} parent=11 // pred_check_branch
          %196 = sbr.rel (%p194) target = $region20
        $region19: #{tpu_custom_call.1} parent=11 // pred_region
          _
        $region20: #{tpu_custom_call.1} parent=11 // pred_fallthru
          _
      $region12: #{tpu_custom_call.1} parent=5 // pred_fallthru
        _
      %p197 = scmp.lt.s32.totalorder %s22, 2
      // Predicated region
      $region21: #{tpu_custom_call.1} parent=5 // pred_check
        %p198 = pneg %p197
      $region22: #{tpu_custom_call.1} parent=5 // pred_check_branch
        %200 = sbr.rel (%p198) target = $region24
      $region23: #{tpu_custom_call.1} parent=5 // pred_region
        // Predicated region
        $region25: #{tpu_custom_call.1} parent=23 // pred_check
          %p201 = pneg %p84
        $region26: #{tpu_custom_call.1} parent=23 // pred_check_branch
          %203 = sbr.rel (%p201) target = $region28
        $region27: #{tpu_custom_call.1} parent=23 // pred_region
          %s204 = sand.u32 %s22, 1
          %s205 = scalar_lea.sflag [#allocation6], %s204
          %s206 = sand.u32 %s74, 1
          %s207 = smul.addr %s206, 8
          %s208 = scalar_lea.vmem [#allocation5], %s207
          %s210 = ssub.s32 128, 128
          %211 = vsyncadd %s205, %s210
          %s212 = smul.addr %s22, 128
          %s213 = scalar_lea.hbm %s2, %s212
          %s215 = sshll.u32 %s208, 4
          %s216 = int_to_ptr.vmem [resolvable:$true] %s215
          %218 = dma.hbm_to_vmem [thread:$0]  %s213, 128, %s216, %s205
        $region28: #{tpu_custom_call.1} parent=23 // pred_fallthru
          _
        // Predicated region
        $region29: #{tpu_custom_call.1} parent=23 // pred_check
          %p219 = pneg %p110
        $region30: #{tpu_custom_call.1} parent=23 // pred_check_branch
          %221 = sbr.rel (%p219) target = $region32
        $region31: #{tpu_custom_call.1} parent=23 // pred_region
          %s222 = sand.u32 %s22, 1
          %s223 = scalar_lea.sflag [#allocation6], %s222
          %s224 = sand.u32 %s100, 1
          %s225 = smul.addr %s224, 8
          %s226 = scalar_lea.vmem [#allocation7], %s225
          %s228 = ssub.s32 128, 128
          %229 = vsyncadd %s223, %s228
          %s230 = smul.addr %s22, 128
          %s231 = scalar_lea.hbm %s3, %s230
          %s233 = sshll.u32 %s226, 4
          %s234 = int_to_ptr.vmem [resolvable:$true] %s233
          %236 = dma.hbm_to_vmem [thread:$0]  %s231, 128, %s234, %s223
        $region32: #{tpu_custom_call.1} parent=23 // pred_fallthru
          _
      $region24: #{tpu_custom_call.1} parent=5 // pred_fallthru
        _
      %p237 = scmp.le.s32.totalorder 1, %s22
      %p238 = scmp.lt.s32.totalorder %s22, 3
      %p239 = pnand %p237, %p238
      %p240 = pneg %p239
      // Predicated region
      $region33: #{tpu_custom_call.1} parent=5 // pred_check
        _
      $region34: #{tpu_custom_call.1} parent=5 // pred_check_branch
        %242 = sbr.rel (%p239) target = $region36
      $region35: #{tpu_custom_call.1} parent=5 // pred_region
        %s243 = ssub.s32 %s22, 1
        // Predicated region
        $region37: #{tpu_custom_call.1} parent=35 // pred_check
          %p244 = pneg %p43
        $region38: #{tpu_custom_call.1} parent=35 // pred_check_branch
          %246 = sbr.rel (%p244) target = $region40
        $region39: #{tpu_custom_call.1} parent=35 // pred_region
          %247 = dma.done [#allocation3], 32
        $region40: #{tpu_custom_call.1} parent=35 // pred_fallthru
          _
        %s248 = sand.u32 %s27, 1
        %s249 = scalar_lea.sflag [#allocation6], %s248
        %s250 = sand.u32 %s77, 1
        %s251 = smul.addr %s250, 8
        %s252 = scalar_lea.vmem [#allocation5], %s251
        // Predicated region
        $region41: #{tpu_custom_call.1} parent=35 // pred_check
          %p253 = pneg %p90
        $region42: #{tpu_custom_call.1} parent=35 // pred_check_branch
          %255 = sbr.rel (%p253) target = $region44
        $region43: #{tpu_custom_call.1} parent=35 // pred_region
          %256 = dma.done %s249, 128
        $region44: #{tpu_custom_call.1} parent=35 // pred_fallthru
          _
        %s257 = sand.u32 %s27, 1
        %s258 = scalar_lea.sflag [#allocation6], %s257
        %s259 = sand.u32 %s103, 1
        %s260 = smul.addr %s259, 8
        %s261 = scalar_lea.vmem [#allocation7], %s260
        // Predicated region
        $region45: #{tpu_custom_call.1} parent=35 // pred_check
          %p262 = pneg %p116
        $region46: #{tpu_custom_call.1} parent=35 // pred_check_branch
          %264 = sbr.rel (%p262) target = $region48
        $region47: #{tpu_custom_call.1} parent=35 // pred_region
          %265 = dma.done %s258, 128
        $region48: #{tpu_custom_call.1} parent=35 // pred_fallthru
          _
        %p266 = pneg %p43
        %p267 = pneg %p40
        %p268 = pneg %p64
        %p269 = pneg %p61
        %s270 = sand.u32 %s27, 1
        %s271 = scalar_lea.sflag [#allocation6], %s270
        %s272 = sand.u32 %s77, 1
        %s273 = smul.addr %s272, 8
        %s274 = scalar_lea.vmem [#allocation5], %s273
        %p275 = pneg %p90
        %p276 = pneg %p87
        %s277 = sand.u32 %s27, 1
        %s278 = scalar_lea.sflag [#allocation6], %s277
        %s279 = sand.u32 %s103, 1
        %s280 = smul.addr %s279, 8
        %s281 = scalar_lea.vmem [#allocation7], %s280
        %p282 = pneg %p116
        %p283 = pneg %p113
        %p284 = pneg %p142
        %p285 = pneg %p139
        %s286 = sand.u32 %s129, 1
        %s287 = scalar_lea.sflag [#allocation4], %s286
        %s288 = sand.u32 %s129, 1
        %s289 = smul.addr %s288, 8
        %s290 = scalar_lea.vmem [#allocation8], %s289
        %p291 = pneg %p168
        %p292 = pneg %p165
        %s293 = sand.u32 %s155, 1
        %s294 = scalar_lea.sflag [#allocation10], %s293
        %s295 = sand.u32 %s155, 1
        %s296 = smul.addr %s295, 8
        %s297 = scalar_lea.vmem [#allocation9], %s296
        %v298 = vld [vmem:[%s252] sm:$0xff]
        %299 = vadd.xlane.f32.xlu0 %v298
        %v300 = vpop.xlane.xlu0 %299
        %v301 = vmul.f32 %v300, 0.0078125
        %v302 = vsub.f32 %v298, %v301
        %v303 = vmul.f32 %v302, %v302
        %304 = vadd.xlane.f32.xlu0 %v303
        %v305 = vpop.xlane.xlu0 %304
        %v306 = vmul.f32 %v305, 0.0078125
        %v307 = vadd.f32 %v306, 1e-05
        %v308 = vrsqrt.pop %v307
        %v309 = vld [vmem:[#allocation2] sm:$0x1]
        %v310 = vld [vmem:[%s1] sm:$0x1]
        %v311 = vmul.f32 %v302, %v308
        %v312 = vlaneseq
        %v313 = vshrl.u32 %v312, 7
        %v314 = vsub.s32 0, %v313
        %v315 = vrot.slane %v309, %v314
        %v316 = vmul.f32 %v311, %v315
        %v317 = vlaneseq
        %v318 = vshrl.u32 %v317, 7
        %v319 = vsub.s32 0, %v318
        %v320 = vrot.slane %v310, %v319
        %v321 = vadd.f32 %v316, %v320
        %322 = vst [vmem:[%s290] sm:$0xff] %v321
        %v323 = vld [vmem:[%s261] sm:$0xff]
        %324 = vadd.xlane.f32.xlu0 %v323
        %v325 = vpop.xlane.xlu0 %324
        %v326 = vmul.f32 %v325, 0.0078125
        %v327 = vsub.f32 %v323, %v326
        %v328 = vmul.f32 %v327, %v327
        %329 = vadd.xlane.f32.xlu0 %v328
        %v330 = vpop.xlane.xlu0 %329
        %v331 = vmul.f32 %v330, 0.0078125
        %v332 = vadd.f32 %v331, 1e-05
        %v333 = vrsqrt.pop %v332
        %v334 = vld [vmem:[#allocation2 + $0x1] sm:$0x1]
        %v335 = vld [vmem:[%s1 + $0x1] sm:$0x1]
        %v336 = vmul.f32 %v327, %v333
        %v337 = vlaneseq
        %v338 = vshrl.u32 %v337, 7
        %v339 = vsub.s32 0, %v338
        %v340 = vrot.slane %v334, %v339
        %v341 = vmul.f32 %v336, %v340
        %v342 = vlaneseq
        %v343 = vshrl.u32 %v342, 7
        %v344 = vsub.s32 0, %v343
        %v345 = vrot.slane %v335, %v344
        %v346 = vadd.f32 %v341, %v345
        %347 = vst [vmem:[%s297] sm:$0xff] %v346
        %s348 = sand.u32 %s129, 1
        %s349 = scalar_lea.sflag [#allocation4], %s348
        %s350 = sand.u32 %s129, 1
        %s351 = smul.addr %s350, 8
        %s352 = scalar_lea.vmem [#allocation8], %s351
        %s353 = sand.u32 %s155, 1
        %s354 = scalar_lea.sflag [#allocation10], %s353
        %s355 = sand.u32 %s155, 1
        %s356 = smul.addr %s355, 8
        %s357 = scalar_lea.vmem [#allocation9], %s356
        // Predicated region
        $region49: #{tpu_custom_call.1} parent=35 // pred_check
          %p358 = pneg %p139
        $region50: #{tpu_custom_call.1} parent=35 // pred_check_branch
          %360 = sbr.rel (%p358) target = $region52
        $region51: #{tpu_custom_call.1} parent=35 // pred_region
          %s362 = ssub.s32 128, 128
          %363 = vsyncadd %s349, %s362
          %s364 = smul.addr %s27, 128
          %s365 = scalar_lea.hbm %s4, %s364
          %s367 = sshll.u32 %s352, 4
          %s368 = int_to_ptr.vmem [resolvable:$true] %s367
          %370 = dma.vmem_to_hbm [thread:$0]  %s368, 128, %s365, %s349
        $region52: #{tpu_custom_call.1} parent=35 // pred_fallthru
          _
        // Predicated region
        $region53: #{tpu_custom_call.1} parent=35 // pred_check
          %p371 = pneg %p165
        $region54: #{tpu_custom_call.1} parent=35 // pred_check_branch
          %373 = sbr.rel (%p371) target = $region56
        $region55: #{tpu_custom_call.1} parent=35 // pred_region
          %s375 = ssub.s32 128, 128
          %376 = vsyncadd %s354, %s375
          %s377 = smul.addr %s27, 128
          %s378 = scalar_lea.hbm %s5, %s377
          %s380 = sshll.u32 %s357, 4
          %s381 = int_to_ptr.vmem [resolvable:$true] %s380
          %383 = dma.vmem_to_hbm [thread:$0]  %s381, 128, %s378, %s354
        $region56: #{tpu_custom_call.1} parent=35 // pred_fallthru
          _
      $region36: #{tpu_custom_call.1} parent=5 // pred_fallthru
        _
      %p384 = scmp.le.s32.totalorder 2, %s22
      // Predicated region
      $region57: #{tpu_custom_call.1} parent=5 // pred_check
        %p385 = pneg %p384
      $region58: #{tpu_custom_call.1} parent=5 // pred_check_branch
        %387 = sbr.rel (%p385) target = $region60
      $region59: #{tpu_custom_call.1} parent=5 // pred_region
        %s388 = ssub.s32 %s22, 2
        // Predicated region
        $region61: #{tpu_custom_call.1} parent=59 // pred_check
          %p389 = pneg %p145
        $region62: #{tpu_custom_call.1} parent=59 // pred_check_branch
          %391 = sbr.rel (%p389) target = $region64
        $region63: #{tpu_custom_call.1} parent=59 // pred_region
          %s392 = sand.u32 %s130, 1
          %s393 = scalar_lea.sflag [#allocation4], %s392
          %s394 = sand.u32 %s130, 1
          %s395 = smul.addr %s394, 8
          %s396 = scalar_lea.vmem [#allocation8], %s395
          %397 = dma.done %s393, 128
        $region64: #{tpu_custom_call.1} parent=59 // pred_fallthru
          _
        // Predicated region
        $region65: #{tpu_custom_call.1} parent=59 // pred_check
          %p398 = pneg %p171
        $region66: #{tpu_custom_call.1} parent=59 // pred_check_branch
          %400 = sbr.rel (%p398) target = $region68
        $region67: #{tpu_custom_call.1} parent=59 // pred_region
          %s401 = sand.u32 %s156, 1
          %s402 = scalar_lea.sflag [#allocation10], %s401
          %s403 = sand.u32 %s156, 1
          %s404 = smul.addr %s403, 8
          %s405 = scalar_lea.vmem [#allocation9], %s404
          %406 = dma.done %s402, 128
        $region68: #{tpu_custom_call.1} parent=59 // pred_fallthru
          _
      $region60: #{tpu_custom_call.1} parent=5 // pred_fallthru
        _
    $region6: #{tpu_custom_call.1} parent=1 // loop_footer
      %s26 = sadd.s32 1, %s22
    $region7: #{tpu_custom_call.1} parent=1 // loop_footer_branch
      %21 = sbr.rel target = $region3
    $region8: #{tpu_custom_call.1} parent=1 // loop_exit
      _
    %407 = vsyncpa [#allocation3], 1
    %s408 = scalar_lea.sflag [#allocation3], 1
    %409 = vsyncpa %s408, 1
    %410 = vsyncpa [#allocation6], 1
    %s411 = scalar_lea.sflag [#allocation6], 1
    %412 = vsyncpa %s411, 1
    %413 = vsyncpa [#allocation4], 1
    %s414 = scalar_lea.sflag [#allocation4], 1
    %415 = vsyncpa %s414, 1
    %416 = vsyncpa [#allocation10], 1
    %s417 = scalar_lea.sflag [#allocation10], 1
    %418 = vsyncpa %s417, 1

</llo_original>
